<compile_context>
chip_gen: v6e
topology: v6e:2x2x1
jax: 0.10.0
libtpu: 0.0.40
codegen_flags: <defaults>
</compile_context>

<pallas_src>
import jax
import jax.numpy as jnp
from jax.experimental import pallas as pl
from jax.experimental.pallas import tpu as pltpu


# ---------------------------------------------------------------------------
# VMEM budgeting (generation aware)
# ---------------------------------------------------------------------------
def _vmem_budgets():
    """Returns (block_budget_bytes, vmem_limit_bytes) sized per TPU generation."""
    try:
        cap = int(pltpu.get_tpu_info().vmem_capacity_bytes)
    except Exception:
        cap = 64 << 20                      # conservative (v7x per-TC physical)
    block_budget = min(20 << 20, cap // 4)  # double-buffered pipeline blocks
    vmem_limit = min(cap * 3 // 4, max(32 << 20, 2 * block_budget + (8 << 20)))
    return block_budget, vmem_limit


def _pick_hw_tile(hw, height, c, itemsize, budget_bytes, prefer_split):
    """Lane-tile for the HW axis: a multiple of 128 whose double-buffered
    blocks (height inputs + output + f32 accumulator) fit the VMEM budget.
    A cdiv grid with a masked tail tile is used when it does not divide HW."""
    if hw <= 128:
        return hw                               # == full array dim, always legal
    per_col = ((height + 1) * itemsize * 2 + 4) * c
    max_elems = max(128, budget_bytes // max(per_col, 1))
    cap = hw
    if prefer_split:                            # >=2 HW tiles (v7x: 2 TCs even for B=1)
        cap = max(128, ((hw // 2) // 128) * 128)
    cap = min(cap, max_elems)
    tile = max(128, (cap // 128) * 128)
    tile = min(tile, (hw // 128) * 128)         # never larger than the array extent
    t = tile
    while t >= 128:                             # prefer a divisor (no masked tail)
        if hw % t == 0 and 2 * t >= tile:
            return t
        t -= 128
    return tile


# ---------------------------------------------------------------------------
# Fused kernel: pooling + MLP + softmax + weighted-sum apply in one pass
# ---------------------------------------------------------------------------
def _sk_fused_kernel(w1t_ref, w2t_ref, *refs):
    # w1t_ref : (d, C)           first 1x1-conv weight (torch layout)
    # w2t_ref : (C*height, d)    second 1x1-conv weight (torch layout)
    # refs    : height x (C, HW) branch tiles, then o_ref (C, HW)
    x_refs = refs[:-1]
    o_ref = refs[-1]
    height = len(x_refs)
    c, hw = o_ref.shape
    inv_hw = jnp.float32(1.0 / hw)

    # pooled = mean over spatial of (sum over branches)  -> (C, 1), f32
    pooled = jnp.sum(x_refs[0][...].astype(jnp.float32), axis=-1, keepdims=True)
    for h in range(1, height):
        pooled = pooled + jnp.sum(x_refs[h][...].astype(jnp.float32),
                                  axis=-1, keepdims=True)
    pooled = pooled * inv_hw

    # tiny MLP (1x1 convs on the pooled vector); MXU-padded, negligible cost
    w1t = w1t_ref[...].astype(jnp.float32)                         # (d, C)
    w2t = w2t_ref[...].astype(jnp.float32)                         # (C*height, d)
    hidden = jnp.maximum(
        jnp.dot(w1t, pooled, preferred_element_type=jnp.float32), 0.0)  # (d, 1)
    logits = [jnp.dot(w2t[h * c:(h + 1) * c, :], hidden,
                      preferred_element_type=jnp.float32)
              for h in range(height)]                               # height x (C, 1)

    # softmax over the branch axis (list of (C,1) column vectors)
    m = logits[0]
    for h in range(1, height):
        m = jnp.maximum(m, logits[h])
    exps = [jnp.exp(l - m) for l in logits]
    denom = exps[0]
    for h in range(1, height):
        denom = denom + exps[h]

    # weighted sum over branches; f32 accumulate, single cast on store
    acc = x_refs[0][...].astype(jnp.float32) * (exps[0] / denom)
    for h in range(1, height):
        acc = acc + x_refs[h][...].astype(jnp.float32) * (exps[h] / denom)
    o_ref[...] = acc.astype(o_ref.dtype)


def _sk_fused_call(xs, w1, w2, B, C, HW, height, dtype, vmem_limit):
    d = w1.shape[1]
    w1t = jnp.transpose(w1).astype(jnp.float32)       # (d, C)
    w2t = jnp.transpose(w2).astype(jnp.float32)       # (C*height, d)

    branch_spec = pl.BlockSpec((None, C, HW), lambda b: (b, 0, 0))
    cost = pl.CostEstimate(
        flops=3 * height * B * C * HW + 2 * B * C * d + 2 * B * d * C * height,
        transcendentals=B * height * C,
        bytes_accessed=(height + 1) * B * C * HW * jnp.dtype(dtype).itemsize
        + (C * d + d * C * height) * 4)

    return pl.pallas_call(
        _sk_fused_kernel,
        out_shape=jax.ShapeDtypeStruct((B, C, HW), dtype),
        grid=(B,),
        in_specs=[pl.BlockSpec((d, C), lambda b: (0, 0)),
                  pl.BlockSpec((C * height, d), lambda b: (0, 0))]
                 + [branch_spec] * height,
        out_specs=pl.BlockSpec((None, C, HW), lambda b: (b, 0, 0)),
        compiler_params=pltpu.CompilerParams(
            dimension_semantics=("parallel",),
            vmem_limit_bytes=vmem_limit),
        cost_estimate=cost,
    )(w1t, w2t, *xs)


# ---------------------------------------------------------------------------
# Tiled fallback: plain-JAX pooled/MLP/softmax + lane-dense apply kernel
# ---------------------------------------------------------------------------
def _sk_apply_kernel(attn_ref, *refs):
    # attn_ref : (C, height) f32 — per-channel branch weights; C on sublanes
    #            matches the (C, THW) tiles so the broadcast is lane-only.
    # refs     : height x (C, THW) branch tiles, then o_ref (C, THW)
    x_refs = refs[:-1]
    o_ref = refs[-1]
    a = attn_ref[...]
    acc = x_refs[0][...].astype(jnp.float32) * a[:, 0:1]
    for h in range(1, len(x_refs)):
        acc = acc + x_refs[h][...].astype(jnp.float32) * a[:, h:h + 1]
    o_ref[...] = acc.astype(o_ref.dtype)


def _sk_tiled_call(xs, w1, w2, B, C, HW, height, dtype, itemsize,
                   block_budget, vmem_limit):
    # pooled = mean over spatial of (sum over branches) == sum of per-branch means
    pooled = xs[0].astype(jnp.float32).mean(axis=-1)
    for x in xs[1:]:
        pooled = pooled + x.astype(jnp.float32).mean(axis=-1)        # (B, C)
    hidden = jnp.maximum(pooled @ w1.astype(jnp.float32), 0.0)       # (B, d)
    logits = hidden @ w2.astype(jnp.float32)                         # (B, C*height)
    attn = jax.nn.softmax(logits.reshape(B, height, C), axis=1)      # (B, height, C)
    attn = jnp.transpose(attn, (0, 2, 1))                            # (B, C, height) f32

    thw = _pick_hw_tile(HW, height, C, itemsize, block_budget,
                        prefer_split=(B == 1))
    n_tiles = pl.cdiv(HW, thw)

    branch_spec = pl.BlockSpec((None, C, thw), lambda b, t: (b, 0, t))
    cost = pl.CostEstimate(
        flops=2 * height * B * C * HW, transcendentals=0,
        bytes_accessed=(height + 1) * B * C * HW * itemsize + B * C * height * 4)

    return pl.pallas_call(
        _sk_apply_kernel,
        out_shape=jax.ShapeDtypeStruct((B, C, HW), dtype),
        grid=(B, n_tiles),
        in_specs=[pl.BlockSpec((None, C, height), lambda b, t: (b, 0, 0))]
                 + [branch_spec] * height,
        out_specs=pl.BlockSpec((None, C, thw), lambda b, t: (b, 0, t)),
        compiler_params=pltpu.CompilerParams(
            dimension_semantics=("parallel", "parallel"),
            vmem_limit_bytes=vmem_limit),
        cost_estimate=cost,
    )(attn, *xs)


# ---------------------------------------------------------------------------
# Public wrapper
# ---------------------------------------------------------------------------
def sk_fusion(in_feats, w1, w2, *, force_tiled=False):
    """in_feats: list of `height` arrays, each (B, C, H, W) NCHW.
       w1: (C, d), w2: (d, C*height) — transposed 1x1-conv weights.
       Returns (B, C, H, W)."""
    B, C, H, W = in_feats[0].shape
    height = len(in_feats)
    HW = H * W
    dtype = in_feats[0].dtype
    itemsize = jnp.dtype(dtype).itemsize

    block_budget, vmem_limit = _vmem_budgets()

    # NCHW -> (B, C, HW): pure reshape per branch (no transpose, no stack).
    xs = [f.reshape(B, C, HW) for f in in_feats]

    # One grid step holds the whole per-batch image in the fused path:
    # height+1 blocks double-buffered + f32 accumulator + slack.
    fused_need = 2 * (height + 1) * C * HW * itemsize + 2 * C * HW * 4 + (1 << 20)
    if (not force_tiled) and fused_need <= block_budget:
        out = _sk_fused_call(xs, w1, w2, B, C, HW, height, dtype, vmem_limit)
    else:
        out = _sk_tiled_call(xs, w1, w2, B, C, HW, height, dtype, itemsize,
                             block_budget, vmem_limit)
    return out.reshape(B, C, H, W)


def _reference(in_feats, w1, w2):
    """Pure-JAX reference mirroring the PyTorch forward."""
    B, C, H, W = in_feats[0].shape
    height = len(in_feats)
    x = jnp.stack(in_feats, axis=1)                       # (B, height, C, H, W)
    feats_sum = jnp.sum(x, axis=1)                        # (B, C, H, W)
    pooled = jnp.mean(feats_sum, axis=(2, 3))             # (B, C)
    hidden = jnp.maximum(pooled @ w1, 0.0)                # (B, d)
    attn = (hidden @ w2).reshape(B, height, C)            # (B, height, C)
    attn = jax.nn.softmax(attn, axis=1)
    return jnp.sum(x * attn[:, :, :, None, None], axis=1)


if __name__ == "__main__":
    # Small deterministic example consistent with SKFusion(dim=4, height=2, reduction=8)
    B, C, H, W = 2, 4, 16, 16
    height = 2
    d = max(C // 8, 4)   # = 4

    key = jax.random.PRNGKey(0)
    k0, k1, k2, k3 = jax.random.split(key, 4)

    feat0 = jax.random.normal(k0, (B, C, H, W), dtype=jnp.float32)
    feat1 = jax.random.normal(k1, (B, C, H, W), dtype=jnp.float32)

    # Conv2d(C, d, 1, bias=False)        weight (d, C, 1, 1)        -> stored as (C, d)
    # Conv2d(d, C*height, 1, bias=False) weight (C*height, d, 1, 1) -> stored as (d, C*height)
    w1 = jax.random.normal(k2, (C, d), dtype=jnp.float32) * 0.5
    w2 = jax.random.normal(k3, (d, C * height), dtype=jnp.float32) * 0.5

    ref = _reference([feat0, feat1], w1, w2)

    # Fused single-pass path (small feature map fits the VMEM block budget).
    out = jax.block_until_ready(sk_fusion([feat0, feat1], w1, w2))
    assert out.shape == (B, C, H, W)
    assert jnp.allclose(out, ref, atol=1e-5, rtol=1e-5), "fused path mismatch"

    # Tiled fallback path (exercised explicitly to keep it covered).
    out_tiled = jax.block_until_ready(
        sk_fusion([feat0, feat1], w1, w2, force_tiled=True))
    assert jnp.allclose(out_tiled, ref, atol=1e-5, rtol=1e-5), "tiled path mismatch"

    print("KERNEL_OK")
</pallas_src>

<mosaic_0001>
module attributes {stable_mosaic.version = 11 : i64} {
  func.func @_sk_fused_kernel(%arg0: i32, %arg1: memref<4x4xf32, #tpu.memory_space<vmem>>, %arg2: memref<8x4xf32, #tpu.memory_space<vmem>>, %arg3: memref<1x4x256xf32, #tpu.memory_space<vmem>>, %arg4: memref<1x4x256xf32, #tpu.memory_space<vmem>>, %arg5: memref<1x4x256xf32, #tpu.memory_space<vmem>>) attributes {dimension_semantics = [#tpu.dimension_semantics<parallel>], iteration_bounds = array<i64: 2>, scalar_prefetch = 0 : i64, scratch_operands = 0 : i64, tpu.core_type = #tpu.core_type<tc>, window_params = [{pipeline_mode = #tpu.pipeline_mode<synchronous>, transform_indices = @transform_0, window_bounds = array<i64: 4, 4>}, {pipeline_mode = #tpu.pipeline_mode<synchronous>, transform_indices = @transform_1, window_bounds = array<i64: 8, 4>}, {transform_indices = @transform_2, window_bounds = array<i64: 1, 4, 256>}, {transform_indices = @transform_3, window_bounds = array<i64: 1, 4, 256>}, {transform_indices = @transform_4, window_bounds = array<i64: 1, 4, 256>}]} {
    %c0 = arith.constant 0 : index
    %c0_0 = arith.constant 0 : index
    %c0_1 = arith.constant 0 : index
    %0 = vector.load %arg3[%c0, %c0_0, %c0_1] : memref<1x4x256xf32, #tpu.memory_space<vmem>>, vector<1x4x256xf32>
    %1 = vector.shape_cast %0 : vector<1x4x256xf32> to vector<4x256xf32>
    %cst = arith.constant dense<0.000000e+00> : vector<4xf32>
    %2 = vector.multi_reduction <add>, %1, %cst [1] : vector<4x256xf32> to vector<4xf32>
    %3 = vector.shape_cast %2 : vector<4xf32> to vector<4x1xf32>
    %c0_2 = arith.constant 0 : index
    %c0_3 = arith.constant 0 : index
    %c0_4 = arith.constant 0 : index
    %4 = vector.load %arg4[%c0_2, %c0_3, %c0_4] : memref<1x4x256xf32, #tpu.memory_space<vmem>>, vector<1x4x256xf32>
    %5 = vector.shape_cast %4 : vector<1x4x256xf32> to vector<4x256xf32>
    %cst_5 = arith.constant dense<0.000000e+00> : vector<4xf32>
    %6 = vector.multi_reduction <add>, %5, %cst_5 [1] : vector<4x256xf32> to vector<4xf32>
    %7 = vector.shape_cast %6 : vector<4xf32> to vector<4x1xf32>
    %8 = arith.addf %3, %7 : vector<4x1xf32>
    %cst_6 = arith.constant 3.906250e-03 : f32
    %9 = vector.broadcast %cst_6 : f32 to vector<4x1xf32>
    %10 = arith.mulf %8, %9 : vector<4x1xf32>
    %c0_7 = arith.constant 0 : index
    %c0_8 = arith.constant 0 : index
    %11 = vector.load %arg1[%c0_7, %c0_8] : memref<4x4xf32, #tpu.memory_space<vmem>>, vector<4x4xf32>
    %c0_9 = arith.constant 0 : index
    %c0_10 = arith.constant 0 : index
    %12 = vector.load %arg2[%c0_9, %c0_10] : memref<8x4xf32, #tpu.memory_space<vmem>>, vector<8x4xf32>
    %cst_11 = arith.constant dense<0.000000e+00> : vector<4x1xf32>
    %13 = tpu.matmul %11, %10, %cst_11 {dimension_numbers = #tpu.dot_dimension_numbers<[1], [0], [0], [1], [0, 0, 1, 1], [], []>} : vector<4x4xf32>, vector<4x1xf32>, vector<4x1xf32> -> vector<4x1xf32>
    %cst_12 = arith.constant 0.000000e+00 : f32
    %14 = vector.broadcast %cst_12 : f32 to vector<4x1xf32>
    %15 = arith.maximumf %13, %14 : vector<4x1xf32>
    %16 = vector.extract_strided_slice %12 {offsets = [0, 0], sizes = [4, 4], strides = [1, 1]} : vector<8x4xf32> to vector<4x4xf32>
    %cst_13 = arith.constant dense<0.000000e+00> : vector<4x1xf32>
    %17 = tpu.matmul %16, %15, %cst_13 {dimension_numbers = #tpu.dot_dimension_numbers<[1], [0], [0], [1], [0, 0, 1, 1], [], []>} : vector<4x4xf32>, vector<4x1xf32>, vector<4x1xf32> -> vector<4x1xf32>
    %18 = vector.extract_strided_slice %12 {offsets = [4, 0], sizes = [4, 4], strides = [1, 1]} : vector<8x4xf32> to vector<4x4xf32>
    %cst_14 = arith.constant dense<0.000000e+00> : vector<4x1xf32>
    %19 = tpu.matmul %18, %15, %cst_14 {dimension_numbers = #tpu.dot_dimension_numbers<[1], [0], [0], [1], [0, 0, 1, 1], [], []>} : vector<4x4xf32>, vector<4x1xf32>, vector<4x1xf32> -> vector<4x1xf32>
    %20 = arith.maximumf %17, %19 : vector<4x1xf32>
    %21 = arith.subf %17, %20 : vector<4x1xf32>
    %22 = math.exp %21 : vector<4x1xf32>
    %23 = arith.subf %19, %20 : vector<4x1xf32>
    %24 = math.exp %23 : vector<4x1xf32>
    %25 = arith.addf %22, %24 : vector<4x1xf32>
    %c0_15 = arith.constant 0 : index
    %c0_16 = arith.constant 0 : index
    %c0_17 = arith.constant 0 : index
    %26 = vector.load %arg3[%c0_15, %c0_16, %c0_17] : memref<1x4x256xf32, #tpu.memory_space<vmem>>, vector<1x4x256xf32>
    %27 = vector.shape_cast %26 : vector<1x4x256xf32> to vector<4x256xf32>
    %28 = arith.divf %22, %25 : vector<4x1xf32>
    %29 = vector.broadcast %28 : vector<4x1xf32> to vector<4x256xf32>
    %30 = arith.mulf %27, %29 : vector<4x256xf32>
    %c0_18 = arith.constant 0 : index
    %c0_19 = arith.constant 0 : index
    %c0_20 = arith.constant 0 : index
    %31 = vector.load %arg4[%c0_18, %c0_19, %c0_20] : memref<1x4x256xf32, #tpu.memory_space<vmem>>, vector<1x4x256xf32>
    %32 = vector.shape_cast %31 : vector<1x4x256xf32> to vector<4x256xf32>
    %33 = arith.divf %24, %25 : vector<4x1xf32>
    %34 = vector.broadcast %33 : vector<4x1xf32> to vector<4x256xf32>
    %35 = arith.mulf %32, %34 : vector<4x256xf32>
    %36 = arith.addf %30, %35 : vector<4x256xf32>
    %c0_21 = arith.constant 0 : index
    %c0_22 = arith.constant 0 : index
    %c0_23 = arith.constant 0 : index
    %37 = vector.load %arg5[%c0_21, %c0_22, %c0_23] : memref<1x4x256xf32, #tpu.memory_space<vmem>>, vector<1x4x256xf32>
    %38 = vector.shape_cast %37 : vector<1x4x256xf32> to vector<4x256xf32>
    %39 = vector.shape_cast %36 : vector<4x256xf32> to vector<1x4x256xf32>
    tpu.vector_store %arg5[%c0_21, %c0_22, %c0_23], %39 {strides = array<i32>} : memref<1x4x256xf32, #tpu.memory_space<vmem>>, vector<1x4x256xf32>,
    return
  }
  func.func @transform_0(%arg0: i32) -> (i32, i32) {
    %c0_i32 = arith.constant 0 : i32
    %c0_i32_0 = arith.constant 0 : i32
    %c0_i32_1 = arith.constant 0 : i32
    return %c0_i32, %c0_i32_0 : i32, i32
  }
  func.func @transform_1(%arg0: i32) -> (i32, i32) {
    %c0_i32 = arith.constant 0 : i32
    %c0_i32_0 = arith.constant 0 : i32
    %c0_i32_1 = arith.constant 0 : i32
    return %c0_i32, %c0_i32_0 : i32, i32
  }
  func.func @transform_2(%arg0: i32) -> (i32, i32, i32) {
    %c0_i32 = arith.constant 0 : i32
    %c0_i32_0 = arith.constant 0 : i32
    %c0_i32_1 = arith.constant 0 : i32
    return %arg0, %c0_i32, %c0_i32_0 : i32, i32, i32
  }
  func.func @transform_3(%arg0: i32) -> (i32, i32, i32) {
    %c0_i32 = arith.constant 0 : i32
    %c0_i32_0 = arith.constant 0 : i32
    %c0_i32_1 = arith.constant 0 : i32
    return %arg0, %c0_i32, %c0_i32_0 : i32, i32, i32
  }
  func.func @transform_4(%arg0: i32) -> (i32, i32, i32) {
    %c0_i32 = arith.constant 0 : i32
    %c0_i32_0 = arith.constant 0 : i32
    %c0_i32_1 = arith.constant 0 : i32
    return %arg0, %c0_i32, %c0_i32_0 : i32, i32, i32
  }
}

</mosaic_0001>

<llo_original>
// kernel: tpu_custom_call.1
$region0: #{tpu_custom_call.1}
  #allocation0 [shape = 'u32[]', space=smem, size = 0x4, offset = 0x4, fixed_abs, tag = 'smem constant byte address 0x4 - core index']
  #allocation1 [shape = 'u32[144,128]{1,0:T(1,128)}', space=vmem, size = 0x12000, scoped, tag = 'internal scratch']
  %s0 = inlined_call_operand.hbm [shape: f32[4,4], index: 0, kind: input, shape index: {}]
  %s1 = inlined_call_operand.vmem [shape: f32[8,4], index: 1, kind: input, shape index: {}]
  %s2 = inlined_call_operand.hbm [shape: f32[2,4,256], index: 2, kind: input, shape index: {}]
  %s3 = inlined_call_operand.vmem [shape: f32[2,4,256], index: 3, kind: input, shape index: {}]
  %s4 = inlined_call_operand.hbm [shape: f32[2,4,256], index: 4, kind: output, shape index: {}]
  %s5 = sld [smem:[#allocation0]]
  $region57: #{tpu_custom_call.1} parent=0
    _
  %s7 = ssub.s32 1, %s5
  %s8 = scalar_select 0, %s7, %s5
  $region1: #{tpu_custom_call.1} parent=0
    #allocation2 [shape = 'u8[2048]{0}', space=vmem, size = 0x800, scoped, tag = 'input window, operand 0, single buffered']
    #allocation3 [shape = 's32[2]{0}', space=sflag, size = 0x8, scoped, tag = 'scoped memory for tpu_custom_call.1']
    #allocation4 [shape = 's32[2]{0}', space=sflag, size = 0x8, scoped, tag = 'scoped memory for tpu_custom_call.1']
    #allocation5 [shape = 'u8[8192]{0}', space=vmem, size = 0x2000, scoped, tag = 'input window, operand 2']
    #allocation6 [shape = 's32[2]{0}', space=sflag, size = 0x8, scoped, tag = 'scoped memory for tpu_custom_call.1']
    #allocation7 [shape = 'u8[8192]{0}', space=vmem, size = 0x2000, scoped, tag = 'output window, operand 0']
    %9 = vsyncpa [#allocation3], 0
    %10 = vsyncpa [#allocation6], 0
    %s11 = scalar_lea.sflag [#allocation6], 1
    %12 = vsyncpa %s11, 0
    %13 = vsyncpa [#allocation4], 0
    %s14 = scalar_lea.sflag [#allocation4], 1
    %15 = vsyncpa %s14, 0
    loop: start=0, step=1, limit=4
    $region2: #{tpu_custom_call.1} parent=1 // loop_pre_header
      _
    $region3: #{tpu_custom_call.1} parent=1 // loop_header
      %s17 = sphi 0, %s21
      %p18 = scmp.ge.s32.totalorder %s17, 4
      %s25 = sphi 0, %s25
      %s27 = sphi 0, %s25
      %s28 = sphi 0, %s27
      %s42 = sphi 0, %s28
      %s46 = sphi 0, %s46
      %s48 = sphi 0, %s46
      %s49 = sphi 0, %s48
      %s63 = sphi 0, %s49
      %s69 = sphi 0, %s71
      %s72 = sphi 0, %s69
      %s73 = sphi 0, %s72
      %s89 = sphi 0, %s73
      %s95 = sphi 0, %s97
      %s98 = sphi 0, %s95
      %s99 = sphi 0, %s98
      %s115 = sphi 0, %s99
      %s121 = sphi 0, %s123
      %s124 = sphi 0, %s121
      %s125 = sphi 0, %s124
      %s141 = sphi 0, %s125
    $region4: #{tpu_custom_call.1} parent=1 // loop_header_branch
      %20 = sbr.rel (%p18) target = $region8
    $region5: #{tpu_custom_call.1} parent=1 // loop_body
      %s22 = ssub.s32 %s17, 1
      %s23 = ssub.s32 %s17, 2
      %s24 = sadd.s32 %s17, 1
      %s26 = sadd.s32 %s25, 1
      %p29 = scmp.eq.s32.totalorder %s17, 1
      %p30 = scmp.ne.s32.totalorder %s25, %s27
      %p31 = scmp.eq.s32.totalorder %s17, 0
      %p32 = por %p30, %p31
      %p33 = scmp.ne.s32.totalorder %s25, %s27
      %p34 = scmp.eq.s32.totalorder %s22, 1
      %p35 = por %p33, %p34
      %p36 = scmp.ne.s32.totalorder %s27, %s28
      %p37 = scmp.eq.s32.totalorder %s22, 0
      %p38 = por %p36, %p37
      %p39 = scmp.ne.s32.totalorder %s27, %s28
      %p40 = scmp.eq.s32.totalorder %s23, 1
      %p41 = por %p39, %p40
      %p43 = scmp.ne.s32.totalorder %s28, %s42
      %p44 = scmp.eq.s32.totalorder %s23, 0
      %p45 = por %p43, %p44
      %s47 = sadd.s32 %s46, 1
      %p50 = scmp.eq.s32.totalorder %s17, 1
      %p51 = scmp.ne.s32.totalorder %s46, %s48
      %p52 = scmp.eq.s32.totalorder %s17, 0
      %p53 = por %p51, %p52
      %p54 = scmp.ne.s32.totalorder %s46, %s48
      %p55 = scmp.eq.s32.totalorder %s22, 1
      %p56 = por %p54, %p55
      %p57 = scmp.ne.s32.totalorder %s48, %s49
      %p58 = scmp.eq.s32.totalorder %s22, 0
      %p59 = por %p57, %p58
      %p60 = scmp.ne.s32.totalorder %s48, %s49
      %p61 = scmp.eq.s32.totalorder %s23, 1
      %p62 = por %p60, %p61
      %p64 = scmp.ne.s32.totalorder %s49, %s63
      %p65 = scmp.eq.s32.totalorder %s23, 0
      %p66 = por %p64, %p65
      %s67 = ssub.s32 %s17, %s24
      %p68 = scmp.eq.s32.totalorder %s67, 0
      %s70 = sadd.s32 %s69, 1
      %s71 = scalar_select %p68, %s69, %s70
      %p74 = pneg %p68
      %p75 = scmp.eq.s32.totalorder %s17, 1
      %p76 = por %p74, %p75
      %p77 = scmp.ne.s32.totalorder %s69, %s72
      %p78 = scmp.eq.s32.totalorder %s17, 0
      %p79 = por %p77, %p78
      %p80 = scmp.ne.s32.totalorder %s69, %s72
      %p81 = scmp.eq.s32.totalorder %s22, 1
      %p82 = por %p80, %p81
      %p83 = scmp.ne.s32.totalorder %s72, %s73
      %p84 = scmp.eq.s32.totalorder %s22, 0
      %p85 = por %p83, %p84
      %p86 = scmp.ne.s32.totalorder %s72, %s73
      %p87 = scmp.eq.s32.totalorder %s23, 1
      %p88 = por %p86, %p87
      %p90 = scmp.ne.s32.totalorder %s73, %s89
      %p91 = scmp.eq.s32.totalorder %s23, 0
      %p92 = por %p90, %p91
      %s93 = ssub.s32 %s17, %s24
      %p94 = scmp.eq.s32.totalorder %s93, 0
      %s96 = sadd.s32 %s95, 1
      %s97 = scalar_select %p94, %s95, %s96
      %p100 = pneg %p94
      %p101 = scmp.eq.s32.totalorder %s17, 1
      %p102 = por %p100, %p101
      %p103 = scmp.ne.s32.totalorder %s95, %s98
      %p104 = scmp.eq.s32.totalorder %s17, 0
      %p105 = por %p103, %p104
      %p106 = scmp.ne.s32.totalorder %s95, %s98
      %p107 = scmp.eq.s32.totalorder %s22, 1
      %p108 = por %p106, %p107
      %p109 = scmp.ne.s32.totalorder %s98, %s99
      %p110 = scmp.eq.s32.totalorder %s22, 0
      %p111 = por %p109, %p110
      %p112 = scmp.ne.s32.totalorder %s98, %s99
      %p113 = scmp.eq.s32.totalorder %s23, 1
      %p114 = por %p112, %p113
      %p116 = scmp.ne.s32.totalorder %s99, %s115
      %p117 = scmp.eq.s32.totalorder %s23, 0
      %p118 = por %p116, %p117
      %s119 = ssub.s32 %s17, %s24
      %p120 = scmp.eq.s32.totalorder %s119, 0
      %s122 = sadd.s32 %s121, 1
      %s123 = scalar_select %p120, %s121, %s122
      %p126 = pneg %p120
      %p127 = scmp.eq.s32.totalorder %s17, 1
      %p128 = por %p126, %p127
      %p129 = scmp.ne.s32.totalorder %s121, %s124
      %p130 = scmp.eq.s32.totalorder %s17, 0
      %p131 = por %p129, %p130
      %p132 = scmp.ne.s32.totalorder %s121, %s124
      %p133 = scmp.eq.s32.totalorder %s22, 1
      %p134 = por %p132, %p133
      %p135 = scmp.ne.s32.totalorder %s124, %s125
      %p136 = scmp.eq.s32.totalorder %s22, 0
      %p137 = por %p135, %p136
      %p138 = scmp.ne.s32.totalorder %s124, %s125
      %p139 = scmp.eq.s32.totalorder %s23, 1
      %p140 = por %p138, %p139
      %p142 = scmp.ne.s32.totalorder %s125, %s141
      %p143 = scmp.eq.s32.totalorder %s23, 0
      %p144 = por %p142, %p143
      %p145 = scmp.le.s32.totalorder 1, %s17
      %p146 = scmp.lt.s32.totalorder %s17, 3
      %p147 = pnand %p145, %p146
      %p148 = pneg %p147
      // Predicated region
      $region9: #{tpu_custom_call.1} parent=5 // pred_check
        _
      $region10: #{tpu_custom_call.1} parent=5 // pred_check_branch
        %150 = sbr.rel (%p147) target = $region12
      $region11: #{tpu_custom_call.1} parent=5 // pred_region
        %s151 = ssub.s32 %s17, 1
        // Predicated region
        $region13: #{tpu_custom_call.1} parent=11 // pred_check
          %p152 = pneg %p38
        $region14: #{tpu_custom_call.1} parent=11 // pred_check_branch
          %154 = sbr.rel (%p152) target = $region16
        $region15: #{tpu_custom_call.1} parent=11 // pred_region
          %s156 = ssub.s32 64, 64
          %157 = vsyncadd [#allocation3], %s156
          %s159 = sshll.u32 [#allocation2], 4
          %s160 = int_to_ptr.vmem [resolvable:$true] %s159
          %162 = dma.hbm_to_vmem [thread:$0]  %s0, 64, %s160, [#allocation3]
        $region16: #{tpu_custom_call.1} parent=11 // pred_fallthru
          _
        // Predicated region
        $region17: #{tpu_custom_call.1} parent=11 // pred_check
          %p163 = pneg %p59
        $region18: #{tpu_custom_call.1} parent=11 // pred_check_branch
          %165 = sbr.rel (%p163) target = $region20
        $region19: #{tpu_custom_call.1} parent=11 // pred_region
          _
        $region20: #{tpu_custom_call.1} parent=11 // pred_fallthru
          _
      $region12: #{tpu_custom_call.1} parent=5 // pred_fallthru
        _
      %p166 = scmp.lt.s32.totalorder %s17, 2
      // Predicated region
      $region21: #{tpu_custom_call.1} parent=5 // pred_check
        %p167 = pneg %p166
      $region22: #{tpu_custom_call.1} parent=5 // pred_check_branch
        %169 = sbr.rel (%p167) target = $region24
      $region23: #{tpu_custom_call.1} parent=5 // pred_region
        // Predicated region
        $region25: #{tpu_custom_call.1} parent=23 // pred_check
          %p170 = pneg %p79
        $region26: #{tpu_custom_call.1} parent=23 // pred_check_branch
          %172 = sbr.rel (%p170) target = $region28
        $region27: #{tpu_custom_call.1} parent=23 // pred_region
          %s173 = sand.u32 %s69, 1
          %s174 = scalar_lea.sflag [#allocation6], %s173
          %s175 = sand.u32 %s69, 1
          %s176 = smul.addr %s175, 8
          %s177 = scalar_lea.vmem [#allocation5], %s176
          %s179 = ssub.s32 128, 128
          %180 = vsyncadd %s174, %s179
          %s181 = smul.addr %s17, 2
          %s182 = smul.addr %s181, 64
          %s183 = scalar_lea.hbm %s2, %s182
          %s185 = sshll.u32 %s177, 4
          %s186 = int_to_ptr.vmem [resolvable:$true] %s185
          %188 = dma.hbm_to_vmem [thread:$0]  %s183, 128, %s186, %s174
        $region28: #{tpu_custom_call.1} parent=23 // pred_fallthru
          _
        // Predicated region
        $region29: #{tpu_custom_call.1} parent=23 // pred_check
          %p189 = pneg %p105
        $region30: #{tpu_custom_call.1} parent=23 // pred_check_branch
          %191 = sbr.rel (%p189) target = $region32
        $region31: #{tpu_custom_call.1} parent=23 // pred_region
          %p192 = scmp.lt.s32.totalorder %s17, 1
          %s193 = scalar_select %p192, %s17, 1
          %s194 = smul.addr %s193, 2
          %s195 = smul.addr %s194, 4
          %s196 = scalar_lea.vmem %s3, %s195
        $region32: #{tpu_custom_call.1} parent=23 // pred_fallthru
          _
      $region24: #{tpu_custom_call.1} parent=5 // pred_fallthru
        _
      %p197 = scmp.le.s32.totalorder 1, %s17
      %p198 = scmp.lt.s32.totalorder %s17, 3
      %p199 = pnand %p197, %p198
      %p200 = pneg %p199
      // Predicated region
      $region33: #{tpu_custom_call.1} parent=5 // pred_check
        _
      $region34: #{tpu_custom_call.1} parent=5 // pred_check_branch
        %202 = sbr.rel (%p199) target = $region36
      $region35: #{tpu_custom_call.1} parent=5 // pred_region
        %s203 = ssub.s32 %s17, 1
        // Predicated region
        $region37: #{tpu_custom_call.1} parent=35 // pred_check
          %p204 = pneg %p38
        $region38: #{tpu_custom_call.1} parent=35 // pred_check_branch
          %206 = sbr.rel (%p204) target = $region40
        $region39: #{tpu_custom_call.1} parent=35 // pred_region
          %207 = dma.done [#allocation3], 64
        $region40: #{tpu_custom_call.1} parent=35 // pred_fallthru
          _
        %s208 = sand.u32 %s72, 1
        %s209 = scalar_lea.sflag [#allocation6], %s208
        %s210 = sand.u32 %s72, 1
        %s211 = smul.addr %s210, 8
        %s212 = scalar_lea.vmem [#allocation5], %s211
        // Predicated region
        $region41: #{tpu_custom_call.1} parent=35 // pred_check
          %p213 = pneg %p85
        $region42: #{tpu_custom_call.1} parent=35 // pred_check_branch
          %215 = sbr.rel (%p213) target = $region44
        $region43: #{tpu_custom_call.1} parent=35 // pred_region
          %216 = dma.done %s209, 128
        $region44: #{tpu_custom_call.1} parent=35 // pred_fallthru
          _
        %p217 = pneg %p38
        %p218 = pneg %p35
        %p219 = pneg %p59
        %p220 = pneg %p56
        %s221 = sand.u32 %s72, 1
        %s222 = scalar_lea.sflag [#allocation6], %s221
        %s223 = sand.u32 %s72, 1
        %s224 = smul.addr %s223, 8
        %s225 = scalar_lea.vmem [#allocation5], %s224
        %p226 = pneg %p85
        %p227 = pneg %p82
        %p228 = scmp.lt.s32.totalorder %s22, 1
        %s229 = scalar_select %p228, %s22, 1
        %s230 = smul.addr %s229, 2
        %s231 = smul.addr %s230, 4
        %s232 = scalar_lea.vmem %s3, %s231
        %p233 = pneg %p111
        %p234 = pneg %p108
        %p235 = pneg %p137
        %p236 = pneg %p134
        %s237 = sand.u32 %s124, 1
        %s238 = scalar_lea.sflag [#allocation4], %s237
        %s239 = sand.u32 %s124, 1
        %s240 = smul.addr %s239, 8
        %s241 = scalar_lea.vmem [#allocation7], %s240
        %p242 = scmp.lt.s32.totalorder %s22, 1
        %s243 = scalar_select %p242, %s22, 1
        %s244 = smul.addr %s243, 2
        %s245 = smul.addr %s244, 4
        %s246 = scalar_lea.vmem %s3, %s245
        %v247 = vld [vmem:[%s212] sm:$0xff]
        %v249 = vcombine.high %v247, %v247
        %vm251 = vcmask 1043456
        %v252 = vsel %vm251, %v247, 0.0
        %v253 = vsel %vm251, %v249, 0.0
        %v254 = vadd.f32 %v252, %v253
        %255 = vadd.xlane.f32.xlu0 %v254
        %v256 = vpop.xlane.xlu0 %255
        %v257 = vld [vmem:[%s246] sm:$0xff]
        %v259 = vcombine.high %v257, %v257
        %v261 = vsel %vm251, %v257, 0.0
        %v262 = vsel %vm251, %v259, 0.0
        %v263 = vadd.f32 %v261, %v262
        %264 = vadd.xlane.f32.xlu0 %v263
        %v265 = vpop.xlane.xlu0 %264
        %v266 = vadd.f32 %v256, %v265
        %v267 = vmul.f32 %v266, 0.00390625
        %v268 = vld [vmem:[#allocation2] sm:$0xf]
        %v269 = vld [vmem:[%s1] sm:$0xff]
        %vm270 = vcmask 31744
        %v272 = vsel %vm270, %v268, 0
        %v275 = vsel %vm251, %v267, 0
        %277 = vmatprep.subr.mxu0 0.0
        %278 = vmatpush1.msra.mxu0 0.0
        %279 = vmatprep.subr.mxu0 0.0
        %280 = vmatpush1.msra.mxu0 0.0
        %281 = vmatprep.subr.mxu0 0.0
        %282 = vmatpush1.msra.mxu0 0.0
        %283 = vmatprep.subr.mxu0 0.0
        %284 = vmatpush1.msra.mxu0 0.0
        %285 = vmatprep.subr.mxu0 0.0
        %286 = vmatpush1.msra.mxu0 0.0
        %287 = vmatprep.subr.mxu0 0.0
        %288 = vmatpush1.msra.mxu0 0.0
        %289 = vmatprep.subr.mxu0 0.0
        %290 = vmatpush1.msra.mxu0 0.0
        %291 = vmatprep.subr.mxu0 0.0
        %292 = vmatpush1.msra.mxu0 0.0
        %293 = vmatprep.subr.mxu0 0.0
        %294 = vmatpush1.msra.mxu0 0.0
        %295 = vmatprep.subr.mxu0 0.0
        %296 = vmatpush1.msra.mxu0 0.0
        %297 = vmatprep.subr.mxu0 0.0
        %298 = vmatpush1.msra.mxu0 0.0
        %299 = vmatprep.subr.mxu0 0.0
        %300 = vmatpush1.msra.mxu0 0.0
        %301 = vmatprep.subr.mxu0 0.0
        %302 = vmatpush1.msra.mxu0 0.0
        %303 = vmatprep.subr.mxu0 0.0
        %304 = vmatpush1.msra.mxu0 0.0
        %305 = vmatprep.subr.mxu0 0.0
        %306 = vmatpush1.msra.mxu0 0.0
        %307 = vmatprep.subr.mxu0 0.0
        %308 = vmatpush1.msra.mxu0 %v275
        %309 = vmatprep.subr.mxu0 0.0
        %310 = vmatpush2.msra.mxu0 0.0
        %311 = vmatprep.subr.mxu0 0.0
        %312 = vmatpush2.msra.mxu0 0.0
        %313 = vmatprep.subr.mxu0 0.0
        %314 = vmatpush2.msra.mxu0 0.0
        %315 = vmatprep.subr.mxu0 0.0
        %316 = vmatpush2.msra.mxu0 0.0
        %317 = vmatprep.subr.mxu0 0.0
        %318 = vmatpush2.msra.mxu0 0.0
        %319 = vmatprep.subr.mxu0 0.0
        %320 = vmatpush2.msra.mxu0 0.0
        %321 = vmatprep.subr.mxu0 0.0
        %322 = vmatpush2.msra.mxu0 0.0
        %323 = vmatprep.subr.mxu0 0.0
        %324 = vmatpush2.msra.mxu0 0.0
        %325 = vmatprep.subr.mxu0 0.0
        %326 = vmatpush2.msra.mxu0 0.0
        %327 = vmatprep.subr.mxu0 0.0
        %328 = vmatpush2.msra.mxu0 0.0
        %329 = vmatprep.subr.mxu0 0.0
        %330 = vmatpush2.msra.mxu0 0.0
        %331 = vmatprep.subr.mxu0 0.0
        %332 = vmatpush2.msra.mxu0 0.0
        %333 = vmatprep.subr.mxu0 0.0
        %334 = vmatpush2.msra.mxu0 0.0
        %335 = vmatprep.subr.mxu0 0.0
        %336 = vmatpush2.msra.mxu0 0.0
        %337 = vmatprep.subr.mxu0 0.0
        %338 = vmatpush2.msra.mxu0 0.0
        %339 = vmatprep.subr.mxu0 0.0
        %340 = vmatpush2.msra.mxu0 0.0
        %341 = vmatprep.mubr.f32.mxu0 0.0
        %342 = vmatmul.mubr.f32.gmra.mxu0 %v272
        %v343 = vpop.f32.mrf.mxu0
        %v344 = vadd.f32 0.0, %v343
        %v345 = vpop.f32.mrf.mxu0
        %346 = vdwg.mxu0
        %v347 = vmax.f32 %v344, 0.0
        %v349 = vsel %vm270, %v269, 0
        %v352 = vsel %vm251, %v347, 0
        %354 = vmatprep.subr.mxu0 0.0
        %355 = vmatpush1.msra.mxu0 0.0
        %356 = vmatprep.subr.mxu0 0.0
        %357 = vmatpush1.msra.mxu0 0.0
        %358 = vmatprep.subr.mxu0 0.0
        %359 = vmatpush1.msra.mxu0 0.0
        %360 = vmatprep.subr.mxu0 0.0
        %361 = vmatpush1.msra.mxu0 0.0
        %362 = vmatprep.subr.mxu0 0.0
        %363 = vmatpush1.msra.mxu0 0.0
        %364 = vmatprep.subr.mxu0 0.0
        %365 = vmatpush1.msra.mxu0 0.0
        %366 = vmatprep.subr.mxu0 0.0
        %367 = vmatpush1.msra.mxu0 0.0
        %368 = vmatprep.subr.mxu0 0.0
        %369 = vmatpush1.msra.mxu0 0.0
        %370 = vmatprep.subr.mxu0 0.0
        %371 = vmatpush1.msra.mxu0 0.0
        %372 = vmatprep.subr.mxu0 0.0
        %373 = vmatpush1.msra.mxu0 0.0
        %374 = vmatprep.subr.mxu0 0.0
        %375 = vmatpush1.msra.mxu0 0.0
        %376 = vmatprep.subr.mxu0 0.0
        %377 = vmatpush1.msra.mxu0 0.0
        %378 = vmatprep.subr.mxu0 0.0
        %379 = vmatpush1.msra.mxu0 0.0
        %380 = vmatprep.subr.mxu0 0.0
        %381 = vmatpush1.msra.mxu0 0.0
        %382 = vmatprep.subr.mxu0 0.0
        %383 = vmatpush1.msra.mxu0 0.0
        %384 = vmatprep.subr.mxu0 0.0
        %385 = vmatpush1.msra.mxu0 %v352
        %386 = vmatprep.subr.mxu0 0.0
        %387 = vmatpush2.msra.mxu0 0.0
        %388 = vmatprep.subr.mxu0 0.0
        %389 = vmatpush2.msra.mxu0 0.0
        %390 = vmatprep.subr.mxu0 0.0
        %391 = vmatpush2.msra.mxu0 0.0
        %392 = vmatprep.subr.mxu0 0.0
        %393 = vmatpush2.msra.mxu0 0.0
        %394 = vmatprep.subr.mxu0 0.0
        %395 = vmatpush2.msra.mxu0 0.0
        %396 = vmatprep.subr.mxu0 0.0
        %397 = vmatpush2.msra.mxu0 0.0
        %398 = vmatprep.subr.mxu0 0.0
        %399 = vmatpush2.msra.mxu0 0.0
        %400 = vmatprep.subr.mxu0 0.0
        %401 = vmatpush2.msra.mxu0 0.0
        %402 = vmatprep.subr.mxu0 0.0
        %403 = vmatpush2.msra.mxu0 0.0
        %404 = vmatprep.subr.mxu0 0.0
        %405 = vmatpush2.msra.mxu0 0.0
        %406 = vmatprep.subr.mxu0 0.0
        %407 = vmatpush2.msra.mxu0 0.0
        %408 = vmatprep.subr.mxu0 0.0
        %409 = vmatpush2.msra.mxu0 0.0
        %410 = vmatprep.subr.mxu0 0.0
        %411 = vmatpush2.msra.mxu0 0.0
        %412 = vmatprep.subr.mxu0 0.0
        %413 = vmatpush2.msra.mxu0 0.0
        %414 = vmatprep.subr.mxu0 0.0
        %415 = vmatpush2.msra.mxu0 0.0
        %416 = vmatprep.subr.mxu0 0.0
        %417 = vmatpush2.msra.mxu0 0.0
        %418 = vmatprep.mubr.f32.mxu0 0.0
        %419 = vmatmul.mubr.f32.gmra.mxu0 %v349
        %v420 = vpop.f32.mrf.mxu0
        %v421 = vadd.f32 0.0, %v420
        %v422 = vpop.f32.mrf.mxu0
        %423 = vdwg.mxu0
        %v424 = vrot.slane %v269, 4
        %v425 = vsel %vm270, %v424, 0
        %427 = vmatprep.subr.mxu0 0.0
        %428 = vmatpush1.msra.mxu0 0.0
        %429 = vmatprep.subr.mxu0 0.0
        %430 = vmatpush1.msra.mxu0 0.0
        %431 = vmatprep.subr.mxu0 0.0
        %432 = vmatpush1.msra.mxu0 0.0
        %433 = vmatprep.subr.mxu0 0.0
        %434 = vmatpush1.msra.mxu0 0.0
        %435 = vmatprep.subr.mxu0 0.0
        %436 = vmatpush1.msra.mxu0 0.0
        %437 = vmatprep.subr.mxu0 0.0
        %438 = vmatpush1.msra.mxu0 0.0
        %439 = vmatprep.subr.mxu0 0.0
        %440 = vmatpush1.msra.mxu0 0.0
        %441 = vmatprep.subr.mxu0 0.0
        %442 = vmatpush1.msra.mxu0 0.0
        %443 = vmatprep.subr.mxu0 0.0
        %444 = vmatpush1.msra.mxu0 0.0
        %445 = vmatprep.subr.mxu0 0.0
        %446 = vmatpush1.msra.mxu0 0.0
        %447 = vmatprep.subr.mxu0 0.0
        %448 = vmatpush1.msra.mxu0 0.0
        %449 = vmatprep.subr.mxu0 0.0
        %450 = vmatpush1.msra.mxu0 0.0
        %451 = vmatprep.subr.mxu0 0.0
        %452 = vmatpush1.msra.mxu0 0.0
        %453 = vmatprep.subr.mxu0 0.0
        %454 = vmatpush1.msra.mxu0 0.0
        %455 = vmatprep.subr.mxu0 0.0
        %456 = vmatpush1.msra.mxu0 0.0
        %457 = vmatprep.subr.mxu0 0.0
        %458 = vmatpush1.msra.mxu0 %v352
        %459 = vmatprep.subr.mxu0 0.0
        %460 = vmatpush2.msra.mxu0 0.0
        %461 = vmatprep.subr.mxu0 0.0
        %462 = vmatpush2.msra.mxu0 0.0
        %463 = vmatprep.subr.mxu0 0.0
        %464 = vmatpush2.msra.mxu0 0.0
        %465 = vmatprep.subr.mxu0 0.0
        %466 = vmatpush2.msra.mxu0 0.0
        %467 = vmatprep.subr.mxu0 0.0
        %468 = vmatpush2.msra.mxu0 0.0
        %469 = vmatprep.subr.mxu0 0.0
        %470 = vmatpush2.msra.mxu0 0.0
        %471 = vmatprep.subr.mxu0 0.0
        %472 = vmatpush2.msra.mxu0 0.0
        %473 = vmatprep.subr.mxu0 0.0
        %474 = vmatpush2.msra.mxu0 0.0
        %475 = vmatprep.subr.mxu0 0.0
        %476 = vmatpush2.msra.mxu0 0.0
        %477 = vmatprep.subr.mxu0 0.0
        %478 = vmatpush2.msra.mxu0 0.0
        %479 = vmatprep.subr.mxu0 0.0
        %480 = vmatpush2.msra.mxu0 0.0
        %481 = vmatprep.subr.mxu0 0.0
        %482 = vmatpush2.msra.mxu0 0.0
        %483 = vmatprep.subr.mxu0 0.0
        %484 = vmatpush2.msra.mxu0 0.0
        %485 = vmatprep.subr.mxu0 0.0
        %486 = vmatpush2.msra.mxu0 0.0
        %487 = vmatprep.subr.mxu0 0.0
        %488 = vmatpush2.msra.mxu0 0.0
        %489 = vmatprep.subr.mxu0 0.0
        %490 = vmatpush2.msra.mxu0 0.0
        %491 = vmatprep.mubr.f32.mxu0 0.0
        %492 = vmatmul.mubr.f32.gmra.mxu0 %v425
        %v493 = vpop.f32.mrf.mxu0
        %v494 = vadd.f32 0.0, %v493
        %v495 = vpop.f32.mrf.mxu0
        %496 = vdwg.mxu0
        %v497 = vmax.f32 %v421, %v494
        %v498 = vsub.f32 %v421, %v497
        %v499 = vmul.f32 %v498, 1.442695
        %v500 = vpow.pop %v499
        %v501 = vsub.f32 %v494, %v497
        %v502 = vmul.f32 %v501, 1.442695
        %v503 = vpow.pop %v502
        %v504 = vadd.f32 %v500, %v503
        %v505 = vrcp.pop %v504
        %v506 = vmul.f32 %v500, %v505
        %508 = vset.pattern.permute.xlu0 0
        %509 = vperm.xlu0 %508, %v506
        %v510 = vpop.permute.xlu0 %509
        %v512 = vunpack.c.l.s4 839922192
        %v513 = vunpack.c.0.s8 %v512
        %v514 = vlaneseq
        %v515 = vshrl.u32 %v514, 7
        %v516 = vsub.s32 %v513, %v515
        %v517 = vrot.slane %v510, %v516
        %v519 = vmul.f32 %v247, %v517
        %v520 = vmul.f32 %v503, %v505
        %522 = vset.pattern.permute.xlu0 0
        %523 = vperm.xlu0 %522, %v520
        %v524 = vpop.permute.xlu0 %523
        %v526 = vunpack.c.l.s4 839922192
        %v527 = vunpack.c.0.s8 %v526
        %v528 = vlaneseq
        %v529 = vshrl.u32 %v528, 7
        %v530 = vsub.s32 %v527, %v529
        %v531 = vrot.slane %v524, %v530
        %v533 = vmul.f32 %v257, %v531
        %v534 = vadd.f32 %v519, %v533
        %535 = vst [vmem:[%s241] sm:$0xff] %v534
        %s536 = sand.u32 %s124, 1
        %s537 = scalar_lea.sflag [#allocation4], %s536
        %s538 = sand.u32 %s124, 1
        %s539 = smul.addr %s538, 8
        %s540 = scalar_lea.vmem [#allocation7], %s539
        // Predicated region
        $region45: #{tpu_custom_call.1} parent=35 // pred_check
          %p541 = pneg %p134
        $region46: #{tpu_custom_call.1} parent=35 // pred_check_branch
          %543 = sbr.rel (%p541) target = $region48
        $region47: #{tpu_custom_call.1} parent=35 // pred_region
          %s545 = ssub.s32 128, 128
          %546 = vsyncadd %s537, %s545
          %s547 = smul.addr %s22, 2
          %s548 = smul.addr %s547, 64
          %s549 = scalar_lea.hbm %s4, %s548
          %s551 = sshll.u32 %s540, 4
          %s552 = int_to_ptr.vmem [resolvable:$true] %s551
          %554 = dma.vmem_to_hbm [thread:$0]  %s552, 128, %s549, %s537
        $region48: #{tpu_custom_call.1} parent=35 // pred_fallthru
          _
      $region36: #{tpu_custom_call.1} parent=5 // pred_fallthru
        _
      %p555 = scmp.le.s32.totalorder 2, %s17
      // Predicated region
      $region49: #{tpu_custom_call.1} parent=5 // pred_check
        %p556 = pneg %p555
      $region50: #{tpu_custom_call.1} parent=5 // pred_check_branch
        %558 = sbr.rel (%p556) target = $region52
      $region51: #{tpu_custom_call.1} parent=5 // pred_region
        %s559 = ssub.s32 %s17, 2
        // Predicated region
        $region53: #{tpu_custom_call.1} parent=51 // pred_check
          %p560 = pneg %p140
        $region54: #{tpu_custom_call.1} parent=51 // pred_check_branch
          %562 = sbr.rel (%p560) target = $region56
        $region55: #{tpu_custom_call.1} parent=51 // pred_region
          %s563 = sand.u32 %s125, 1
          %s564 = scalar_lea.sflag [#allocation4], %s563
          %s565 = sand.u32 %s125, 1
          %s566 = smul.addr %s565, 8
          %s567 = scalar_lea.vmem [#allocation7], %s566
          %568 = dma.done %s564, 128
        $region56: #{tpu_custom_call.1} parent=51 // pred_fallthru
          _
      $region52: #{tpu_custom_call.1} parent=5 // pred_fallthru
        _
    $region6: #{tpu_custom_call.1} parent=1 // loop_footer
      %s21 = sadd.s32 1, %s17
    $region7: #{tpu_custom_call.1} parent=1 // loop_footer_branch
      %16 = sbr.rel target = $region3
    $region8: #{tpu_custom_call.1} parent=1 // loop_exit
      _
    %569 = vsyncpa [#allocation3], 1
    %s570 = scalar_lea.sflag [#allocation3], 1
    %571 = vsyncpa %s570, 1
    %572 = vsyncpa [#allocation6], 1
    %s573 = scalar_lea.sflag [#allocation6], 1
    %574 = vsyncpa %s573, 1
    %575 = vsyncpa [#allocation4], 1
    %s576 = scalar_lea.sflag [#allocation4], 1
    %577 = vsyncpa %s576, 1

</llo_original>
